<compile_context>
chip_gen: v6e
topology: v6e:2x2x1
jax: 0.10.0
libtpu: 0.0.40
codegen_flags: <defaults>
</compile_context>

<pallas_src>
import math
import numpy as np
import jax
import jax.numpy as jnp
from jax.experimental import pallas as pl
from jax.experimental.pallas import tpu as pltpu


# ----------------------------------------------------------------------------
# Synthetic "Mapping" for an A1-like quadruped: 4 bodies, disjoint obs/action
# index sets.  map[k] = (obs_indices, action_indices)
# ----------------------------------------------------------------------------
def make_mapping():
    names = ["FL", "FR", "RL", "RR"]
    obs_dims = [10, 12, 8, 14]   # per-body observation widths (varied on purpose)
    act_dims = [3, 3, 3, 3]      # per-body action widths (A1: 3 joints / leg)
    m, o, a = {}, 0, 0
    for n, od, ad in zip(names, obs_dims, act_dims):
        m[n] = (list(range(o, o + od)), list(range(a, a + ad)))
        o += od
        a += ad
    return m, o, a   # mapping, total_obs_dim, total_action_dim


def _round_up(x, m):
    return ((x + m - 1) // m) * m


# ----------------------------------------------------------------------------
# Deterministic parameter construction (PyTorch nn.Linear-style uniform init).
# Original (un-fused) f32 parameters — these define the reference semantics.
# ----------------------------------------------------------------------------
def _linear_init(key, fan_in, fan_out):
    kw, kb = jax.random.split(key)
    bound = 1.0 / math.sqrt(fan_in)
    w = jax.random.uniform(kw, (fan_in, fan_out), jnp.float32, -bound, bound)
    b = jax.random.uniform(kb, (fan_out,), jnp.float32, -bound, bound)
    return w, b


def make_params(mapping, emb_dim, hidden_dim, net_out_dim, seed=0):
    keys = list(mapping.keys())
    n = len(keys)
    root = jax.random.PRNGKey(seed)
    ks = jax.random.split(root, 2 * n + 2)

    tok = []   # per-body Linear(obs_dim_k, emb_dim)
    for i, k in enumerate(keys):
        d_k = len(mapping[k][0])
        tok.append(_linear_init(ks[i], d_k, emb_dim))

    # Synthetic injected `net`: per-token MLP emb -> hidden -> net_out (ReLU).
    w1, b1 = _linear_init(ks[2 * n], emb_dim, hidden_dim)
    w2, b2 = _linear_init(ks[2 * n + 1], hidden_dim, net_out_dim)

    dtk = []   # per-body Linear(net_out, len(map[k][1]))
    for i, k in enumerate(keys):
        dtk.append(_linear_init(ks[n + i], net_out_dim, len(mapping[k][1])))

    return dict(tok=tok, w1=w1, b1=b1, w2=w2, b2=b2, dtk=dtk)


# ----------------------------------------------------------------------------
# Offline fusion + packing (host-side numpy):  tokenizer∘net_layer1 folded into
# a block-diagonal first weight; net_layer2∘detokenizer-scatter folded into a
# concatenated second weight.  Weights cast to bf16, biases kept f32.
# ----------------------------------------------------------------------------
def pack_fused_params(mapping, params):
    keys = list(mapping.keys())
    n = len(keys)
    w1 = np.asarray(params["w1"]); b1 = np.asarray(params["b1"])
    w2 = np.asarray(params["w2"]); b2 = np.asarray(params["b2"])
    H = w1.shape[1]
    O_net = w2.shape[1]
    obs_dim = max(max(mapping[k][0]) for k in keys) + 1
    action_dim = max(max(mapping[k][1]) for k in keys) + 1

    K_pad = _round_up(obs_dim, 128)       # lane-dense padded obs width (in kernel)
    NH = n * H
    NH_pad = _round_up(NH, 128)           # lane-dense hidden concat
    A_pad = _round_up(action_dim, 128)    # lane-dense output (unmasked stores)

    w1_bd = np.zeros((K_pad, NH_pad), np.float32)
    b1_cat = np.zeros((1, NH_pad), np.float32)
    w2_cat = np.zeros((NH_pad, A_pad), np.float32)
    b_out = np.zeros((1, A_pad), np.float32)

    for i, k in enumerate(keys):
        obs_idx = np.asarray(mapping[k][0], np.int64)
        act_idx = np.asarray(mapping[k][1], np.int64)
        tw = np.asarray(params["tok"][i][0]); tb = np.asarray(params["tok"][i][1])
        dw = np.asarray(params["dtk"][i][0]); db = np.asarray(params["dtk"][i][1])

        # Fold tokenizer into the first net layer (exact).
        W1f = tw @ w1                      # [d_k, H]
        b1f = tb @ w1 + b1                 # [H]
        # Rows placed at the absolute observation indices (no wrapper gather).
        w1_bd[obs_idx, i * H:(i + 1) * H] = W1f
        b1_cat[0, i * H:(i + 1) * H] = b1f

        # Detokenizer scatter matrix (action index sets are disjoint, so the
        # PyTorch index-assignment equals dense accumulation).
        Dscat = np.zeros((O_net, action_dim), np.float32)
        Dscat[:, act_idx] = dw             # dw: [O_net, a_k]
        W2f = w2 @ Dscat                   # [H, action_dim]
        w2_cat[i * H:(i + 1) * H, :action_dim] = W2f

        b_out[0, :action_dim] += b2 @ Dscat
        b_out[0, act_idx] += db

    return dict(
        w1=jnp.asarray(w1_bd, jnp.bfloat16), b1=jnp.asarray(b1_cat, jnp.float32),
        w2=jnp.asarray(w2_cat, jnp.bfloat16), bo=jnp.asarray(b_out, jnp.float32),
        K_pad=K_pad, NH_pad=NH_pad, A_pad=A_pad,
        obs_dim=obs_dim, action_dim=action_dim,
    )


# ----------------------------------------------------------------------------
# Pallas kernel: in-kernel pad/cast of raw f32 obs, then two MXU matmuls
# (bf16 in, f32 accumulate), f32 bias/ReLU, f32 store.
# ----------------------------------------------------------------------------
def body_actor_kernel(obs_ref, w1_ref, b1_ref, w2_ref, bo_ref, out_ref, xpad_ref):
    obs_w = obs_ref.shape[-1]
    # Fused pad + bf16 cast (was a separate wrapper XLA op writing/re-reading a
    # full padded bf16 slab via HBM).  Zero the whole scratch every step: on
    # v7x the "parallel" grid axis may be sharded across TensorCores, so a
    # once-only init keyed on program_id==0 would leave one core's padding
    # lanes uninitialized.  The zero-fill is VMEM-only and trivially cheap.
    xpad_ref[...] = jnp.zeros_like(xpad_ref)
    xpad_ref[:, :obs_w] = obs_ref[...].astype(jnp.bfloat16)

    h = jnp.dot(xpad_ref[...], w1_ref[...], preferred_element_type=jnp.float32)
    h = jnp.maximum(h + b1_ref[...], 0.0)                       # f32 elementwise
    y = jnp.dot(h.astype(w2_ref.dtype), w2_ref[...],
                preferred_element_type=jnp.float32)
    # Output kept f32 (bf16 writeback is an optional further ~25% traffic cut,
    # gated on downstream tolerance).
    out_ref[...] = y + bo_ref[...]


def body_actor_forward(x, fused, batch_tile=1024):
    """x: [B, obs_dim] float32 -> action [B, action_dim] float32."""
    B, obs_in = x.shape
    obs_dim = fused["obs_dim"]
    assert obs_in == obs_dim, f"expected obs_dim={obs_dim}, got {obs_in}"
    K_pad, NH_pad, A_pad = fused["K_pad"], fused["NH_pad"], fused["A_pad"]
    A = fused["action_dim"]

    # Batch tile:
    #  * at least 16 rows (bf16 sublane pack -> unmasked stores, no dead vregs
    #    at tiny B),
    #  * aim for >=2 grid steps on larger batches so both v7x TensorCores get
    #    work under dimension_semantics=("parallel",),
    #  * capped at `batch_tile` (default 1024: per-step pipeline overhead
    #    amortized; double-buffered working set ~3 MiB -> fits v7x's 64 MiB
    #    VMEM with huge headroom, no vmem_limit override needed).
    TB = min(batch_tile, _round_up(pl.cdiv(B, 2), 16))
    B_pad = _round_up(B, TB)

    # Only the (small) batch-dim pad stays in the wrapper; feature pad + bf16
    # cast are fused into the kernel.
    x_pad = x if B_pad == B else jnp.zeros((B_pad, obs_dim), x.dtype).at[:B].set(x)

    flops = 2 * B_pad * (K_pad * NH_pad + NH_pad * A_pad)
    bytes_accessed = (B_pad * obs_dim * 4                       # f32 obs read
                      + B_pad * A_pad * 4                       # f32 action write
                      + (K_pad * NH_pad + NH_pad * A_pad) * 2   # bf16 weights
                      + (NH_pad + A_pad) * 4)                   # f32 biases

    out = pl.pallas_call(
        body_actor_kernel,
        out_shape=jax.ShapeDtypeStruct((B_pad, A_pad), jnp.float32),
        grid=(B_pad // TB,),
        in_specs=[
            # Raw f32 obs tile; last dim uses the full-array-dim exception.
            pl.BlockSpec((TB, obs_dim), lambda i: (i, 0)),
            pl.BlockSpec((K_pad, NH_pad), lambda i: (0, 0)),    # fused W1 (bf16)
            pl.BlockSpec((1, NH_pad), lambda i: (0, 0)),        # fused b1 (f32)
            pl.BlockSpec((NH_pad, A_pad), lambda i: (0, 0)),    # fused W2 (bf16)
            pl.BlockSpec((1, A_pad), lambda i: (0, 0)),         # fused b_out (f32)
        ],
        out_specs=pl.BlockSpec((TB, A_pad), lambda i: (i, 0)),
        scratch_shapes=[pltpu.VMEM((TB, K_pad), jnp.bfloat16)],  # padded obs
        compiler_params=pltpu.CompilerParams(
            dimension_semantics=("parallel",)),                  # v7x: 2 TCs
        cost_estimate=pl.CostEstimate(
            flops=flops, transcendentals=0, bytes_accessed=bytes_accessed),
    )(x_pad, fused["w1"], fused["b1"], fused["w2"], fused["bo"])

    return out[:B, :A]


# ----------------------------------------------------------------------------
# Pure-JAX reference (mirrors the PyTorch forward semantics, full f32, unfused).
# ----------------------------------------------------------------------------
def reference_forward(x, mapping, params):
    keys = list(mapping.keys())
    B = x.shape[0]
    action_dim = max(max(mapping[k][1]) for k in keys) + 1

    # ObsTokenizer
    toks = []
    for i, k in enumerate(keys):
        idx = jnp.asarray(mapping[k][0], jnp.int32)
        tw, tb = params["tok"][i]
        toks.append(x[:, idx] @ tw + tb)
    toks = jnp.stack(toks, axis=1)                         # [B, N, E]

    # net (per-token 2-layer ReLU MLP)
    h = jnp.maximum(toks @ params["w1"] + params["b1"], 0.0)
    y = h @ params["w2"] + params["b2"]                    # [B, N, O]

    # ActionDetokenizer (index assignment; disjoint sets), mu_activation=None.
    action = jnp.zeros((B, action_dim), jnp.float32)
    for i, k in enumerate(keys):
        dw, db = params["dtk"][i]
        cur = y[:, i, :] @ dw + db
        action = action.at[:, jnp.asarray(mapping[k][1], jnp.int32)].set(cur)
    return action


if __name__ == "__main__":
    mapping, obs_dim, action_dim = make_mapping()
    emb_dim, hidden_dim, net_out_dim = 32, 64, 32

    params = make_params(mapping, emb_dim, hidden_dim, net_out_dim, seed=0)
    fused = pack_fused_params(mapping, params)

    # Small batch (B=2): tile rounds up to 16 rows, single grid step.
    x_small = jax.random.normal(jax.random.PRNGKey(0), (2, obs_dim), jnp.float32)
    out_small = jax.block_until_ready(body_actor_forward(x_small, fused))
    ref_small = reference_forward(x_small, mapping, params)
    assert out_small.shape == (2, action_dim)
    assert jnp.allclose(out_small, ref_small, atol=2e-2, rtol=2e-2), \
        f"small-batch mismatch: max err {jnp.max(jnp.abs(out_small - ref_small))}"

    # Larger batch (B=300): 2 grid steps, exercises the parallel batch axis.
    x_big = jax.random.normal(jax.random.PRNGKey(1), (300, obs_dim), jnp.float32)
    out_big = jax.block_until_ready(body_actor_forward(x_big, fused))
    ref_big = reference_forward(x_big, mapping, params)
    assert out_big.shape == (300, action_dim)
    assert jnp.allclose(out_big, ref_big, atol=2e-2, rtol=2e-2), \
        f"big-batch mismatch: max err {jnp.max(jnp.abs(out_big - ref_big))}"

    print("KERNEL_OK")
</pallas_src>

<mosaic_0001>
module attributes {stable_mosaic.version = 11 : i64} {
  func.func @body_actor_kernel(%arg0: i32, %arg1: memref<16x44xf32, #tpu.memory_space<vmem>>, %arg2: memref<128x256xbf16, #tpu.memory_space<vmem>>, %arg3: memref<1x256xf32, #tpu.memory_space<vmem>>, %arg4: memref<256x128xbf16, #tpu.memory_space<vmem>>, %arg5: memref<1x128xf32, #tpu.memory_space<vmem>>, %arg6: memref<16x128xf32, #tpu.memory_space<vmem>>, %arg7: memref<16x128xbf16, #tpu.memory_space<vmem>>) attributes {dimension_semantics = [#tpu.dimension_semantics<parallel>], iteration_bounds = array<i64: 1>, scalar_prefetch = 0 : i64, scratch_operands = 1 : i64, tpu.core_type = #tpu.core_type<tc>, window_params = [{transform_indices = @transform_0, window_bounds = array<i64: 16, 44>}, {pipeline_mode = #tpu.pipeline_mode<synchronous>, transform_indices = @transform_1, window_bounds = array<i64: 128, 256>}, {pipeline_mode = #tpu.pipeline_mode<synchronous>, transform_indices = @transform_2, window_bounds = array<i64: 1, 256>}, {pipeline_mode = #tpu.pipeline_mode<synchronous>, transform_indices = @transform_3, window_bounds = array<i64: 256, 128>}, {pipeline_mode = #tpu.pipeline_mode<synchronous>, transform_indices = @transform_4, window_bounds = array<i64: 1, 128>}, {transform_indices = @transform_5, window_bounds = array<i64: 16, 128>}]} {
    %cst = arith.constant 0.000000e+00 : bf16
    %0 = vector.broadcast %cst : bf16 to vector<16x128xbf16>
    %c0 = arith.constant 0 : index
    %c0_0 = arith.constant 0 : index
    %1 = vector.load %arg7[%c0, %c0_0] : memref<16x128xbf16, #tpu.memory_space<vmem>>, vector<16x128xbf16>
    tpu.vector_store %arg7[%c0, %c0_0], %0 {strides = array<i32>} : memref<16x128xbf16, #tpu.memory_space<vmem>>, vector<16x128xbf16>,
    %c0_1 = arith.constant 0 : index
    %c0_2 = arith.constant 0 : index
    %2 = vector.load %arg1[%c0_1, %c0_2] : memref<16x44xf32, #tpu.memory_space<vmem>>, vector<16x44xf32>
    %3 = arith.truncf %2 : vector<16x44xf32> to vector<16x44xbf16>
    %c0_3 = arith.constant 0 : index
    %c0_4 = arith.constant 0 : index
    %4 = vector.load %arg7[%c0_3, %c0_4] : memref<16x128xbf16, #tpu.memory_space<vmem>>, vector<16x44xbf16>
    tpu.vector_store %arg7[%c0_3, %c0_4], %3 {strides = array<i32>} : memref<16x128xbf16, #tpu.memory_space<vmem>>, vector<16x44xbf16>,
    %c0_5 = arith.constant 0 : index
    %c0_6 = arith.constant 0 : index
    %5 = vector.load %arg7[%c0_5, %c0_6] : memref<16x128xbf16, #tpu.memory_space<vmem>>, vector<16x128xbf16>
    %c0_7 = arith.constant 0 : index
    %c0_8 = arith.constant 0 : index
    %6 = vector.load %arg2[%c0_7, %c0_8] : memref<128x256xbf16, #tpu.memory_space<vmem>>, vector<128x256xbf16>
    %cst_9 = arith.constant dense<0.000000e+00> : vector<16x256xf32>
    %7 = tpu.matmul %5, %6, %cst_9 {dimension_numbers = #tpu.dot_dimension_numbers<[1], [0], [0], [1], [0, 0, 1, 1], [], []>} : vector<16x128xbf16>, vector<128x256xbf16>, vector<16x256xf32> -> vector<16x256xf32>
    %c0_10 = arith.constant 0 : index
    %c0_11 = arith.constant 0 : index
    %8 = vector.load %arg3[%c0_10, %c0_11] : memref<1x256xf32, #tpu.memory_space<vmem>>, vector<1x256xf32>
    %9 = vector.broadcast %8 : vector<1x256xf32> to vector<16x256xf32>
    %10 = arith.addf %7, %9 : vector<16x256xf32>
    %cst_12 = arith.constant 0.000000e+00 : f32
    %11 = vector.broadcast %cst_12 : f32 to vector<16x256xf32>
    %12 = arith.maximumf %10, %11 : vector<16x256xf32>
    %13 = arith.truncf %12 : vector<16x256xf32> to vector<16x256xbf16>
    %c0_13 = arith.constant 0 : index
    %c0_14 = arith.constant 0 : index
    %14 = vector.load %arg4[%c0_13, %c0_14] : memref<256x128xbf16, #tpu.memory_space<vmem>>, vector<256x128xbf16>
    %cst_15 = arith.constant dense<0.000000e+00> : vector<16x128xf32>
    %15 = tpu.matmul %13, %14, %cst_15 {dimension_numbers = #tpu.dot_dimension_numbers<[1], [0], [0], [1], [0, 0, 1, 1], [], []>} : vector<16x256xbf16>, vector<256x128xbf16>, vector<16x128xf32> -> vector<16x128xf32>
    %c0_16 = arith.constant 0 : index
    %c0_17 = arith.constant 0 : index
    %16 = vector.load %arg5[%c0_16, %c0_17] : memref<1x128xf32, #tpu.memory_space<vmem>>, vector<1x128xf32>
    %17 = vector.broadcast %16 : vector<1x128xf32> to vector<16x128xf32>
    %18 = arith.addf %15, %17 : vector<16x128xf32>
    %c0_18 = arith.constant 0 : index
    %c0_19 = arith.constant 0 : index
    %19 = vector.load %arg6[%c0_18, %c0_19] : memref<16x128xf32, #tpu.memory_space<vmem>>, vector<16x128xf32>
    tpu.vector_store %arg6[%c0_18, %c0_19], %18 {strides = array<i32>} : memref<16x128xf32, #tpu.memory_space<vmem>>, vector<16x128xf32>,
    return
  }
  func.func @transform_0(%arg0: i32) -> (i32, i32) {
    %c0_i32 = arith.constant 0 : i32
    %c0_i32_0 = arith.constant 0 : i32
    return %arg0, %c0_i32 : i32, i32
  }
  func.func @transform_1(%arg0: i32) -> (i32, i32) {
    %c0_i32 = arith.constant 0 : i32
    %c0_i32_0 = arith.constant 0 : i32
    %c0_i32_1 = arith.constant 0 : i32
    return %c0_i32, %c0_i32_0 : i32, i32
  }
  func.func @transform_2(%arg0: i32) -> (i32, i32) {
    %c0_i32 = arith.constant 0 : i32
    %c0_i32_0 = arith.constant 0 : i32
    %c0_i32_1 = arith.constant 0 : i32
    return %c0_i32, %c0_i32_0 : i32, i32
  }
  func.func @transform_3(%arg0: i32) -> (i32, i32) {
    %c0_i32 = arith.constant 0 : i32
    %c0_i32_0 = arith.constant 0 : i32
    %c0_i32_1 = arith.constant 0 : i32
    return %c0_i32, %c0_i32_0 : i32, i32
  }
  func.func @transform_4(%arg0: i32) -> (i32, i32) {
    %c0_i32 = arith.constant 0 : i32
    %c0_i32_0 = arith.constant 0 : i32
    %c0_i32_1 = arith.constant 0 : i32
    return %c0_i32, %c0_i32_0 : i32, i32
  }
  func.func @transform_5(%arg0: i32) -> (i32, i32) {
    %c0_i32 = arith.constant 0 : i32
    %c0_i32_0 = arith.constant 0 : i32
    return %arg0, %c0_i32 : i32, i32
  }
}

</mosaic_0001>

<llo_original>
// kernel: tpu_custom_call.1
$region0: #{tpu_custom_call.1}
  #allocation0 [shape = 'u32[]', space=smem, size = 0x4, offset = 0x4, fixed_abs, tag = 'smem constant byte address 0x4 - core index']
  #allocation1 [shape = 'u32[144,128]{1,0:T(1,128)}', space=vmem, size = 0x12000, scoped, tag = 'internal scratch']
  #allocation2 [shape = 'bf16[16,128]{1,0:T(8,128)(2,1)}', space=vmem, size = 0x1000, scoped, tag = 'scratch operand']
  %s0 = inlined_call_operand.hbm [shape: f32[16,44], index: 0, kind: input, shape index: {}]
  %s1 = inlined_call_operand.hbm [shape: bf16[128,256], index: 1, kind: input, shape index: {}]
  %s2 = inlined_call_operand.vmem [shape: f32[1,256], index: 2, kind: input, shape index: {}]
  %s3 = inlined_call_operand.hbm [shape: bf16[256,128], index: 3, kind: input, shape index: {}]
  %s4 = inlined_call_operand.vmem [shape: f32[1,128], index: 4, kind: input, shape index: {}]
  %s5 = inlined_call_operand.hbm [shape: f32[16,128], index: 5, kind: output, shape index: {}]
  %s6 = sld [smem:[#allocation0]]
  $region42: #{tpu_custom_call.1} parent=0
    _
  %s8 = ssub.s32 1, %s6
  %s9 = scalar_select 0, %s8, %s6
  $region1: #{tpu_custom_call.1} parent=0
    #allocation3 [shape = 'u8[8192]{0}', space=vmem, size = 0x2000, scoped, tag = 'input window, operand 0, single buffered']
    #allocation4 [shape = 's32[1]{0}', space=sflag, size = 0x4, scoped, tag = 'scoped memory for tpu_custom_call.1']
    #allocation5 [shape = 's32[1]{0}', space=sflag, size = 0x4, scoped, tag = 'scoped memory for tpu_custom_call.1']
    #allocation6 [shape = 'u8[65536]{0}', space=vmem, size = 0x10000, scoped, tag = 'input window, operand 1, single buffered']
    #allocation7 [shape = 's32[1]{0}', space=sflag, size = 0x4, scoped, tag = 'scoped memory for tpu_custom_call.1']
    #allocation8 [shape = 'u8[65536]{0}', space=vmem, size = 0x10000, scoped, tag = 'input window, operand 3, single buffered']
    #allocation9 [shape = 'u8[8192]{0}', space=vmem, size = 0x2000, scoped, tag = 'output window, operand 0, single buffered']
    %10 = vsyncpa [#allocation4], 0
    %11 = vsyncpa [#allocation7], 0
    %12 = vsyncpa [#allocation5], 0
    // Predicated region
    $region2: #{tpu_custom_call.1} parent=1 // pred_check
      _
    $region3: #{tpu_custom_call.1} parent=1 // pred_check_branch
      %14 = sbr.rel (0) target = $region5
    $region4: #{tpu_custom_call.1} parent=1 // pred_region
      %s16 = ssub.s32 256, 256
      %17 = vsyncadd [#allocation4], %s16
      %s18 = sshll.u32 [#allocation3], 4
      %s19 = int_to_ptr.vmem [resolvable:$true] %s18
      %24 = dma.hbm_to_vmem [thread:$0]  %s0, 256, %s19, [#allocation4], 128, 128, 8
    $region5: #{tpu_custom_call.1} parent=1 // pred_fallthru
      _
    // Predicated region
    $region6: #{tpu_custom_call.1} parent=1 // pred_check
      _
    $region7: #{tpu_custom_call.1} parent=1 // pred_check_branch
      %26 = sbr.rel (0) target = $region9
    $region8: #{tpu_custom_call.1} parent=1 // pred_region
      %s28 = ssub.s32 2048, 2048
      %29 = vsyncadd [#allocation7], %s28
      %s30 = sshll.u32 [#allocation6], 4
      %s31 = int_to_ptr.vmem [resolvable:$true] %s30
      %36 = dma.hbm_to_vmem [thread:$0]  %s1, 2048, %s31, [#allocation7], 128, 128, 8
    $region9: #{tpu_custom_call.1} parent=1 // pred_fallthru
      _
    // Predicated region
    $region10: #{tpu_custom_call.1} parent=1 // pred_check
      _
    $region11: #{tpu_custom_call.1} parent=1 // pred_check_branch
      %38 = sbr.rel (0) target = $region13
    $region12: #{tpu_custom_call.1} parent=1 // pred_region
      _
    $region13: #{tpu_custom_call.1} parent=1 // pred_fallthru
      _
    // Predicated region
    $region14: #{tpu_custom_call.1} parent=1 // pred_check
      _
    $region15: #{tpu_custom_call.1} parent=1 // pred_check_branch
      %40 = sbr.rel (0) target = $region17
    $region16: #{tpu_custom_call.1} parent=1 // pred_region
      %s42 = ssub.s32 2048, 2048
      %43 = vsyncadd [#allocation7], %s42
      %s44 = sshll.u32 [#allocation8], 4
      %s45 = int_to_ptr.vmem [resolvable:$true] %s44
      %50 = dma.hbm_to_vmem [thread:$0]  %s3, 2048, %s45, [#allocation7], 64, 64, 4
    $region17: #{tpu_custom_call.1} parent=1 // pred_fallthru
      _
    // Predicated region
    $region18: #{tpu_custom_call.1} parent=1 // pred_check
      _
    $region19: #{tpu_custom_call.1} parent=1 // pred_check_branch
      %52 = sbr.rel (0) target = $region21
    $region20: #{tpu_custom_call.1} parent=1 // pred_region
      _
    $region21: #{tpu_custom_call.1} parent=1 // pred_fallthru
      _
    // Predicated region
    $region22: #{tpu_custom_call.1} parent=1 // pred_check
      _
    $region23: #{tpu_custom_call.1} parent=1 // pred_check_branch
      %54 = sbr.rel (0) target = $region25
    $region24: #{tpu_custom_call.1} parent=1 // pred_region
      %55 = dma.done [#allocation4], 256
    $region25: #{tpu_custom_call.1} parent=1 // pred_fallthru
      _
    // Predicated region
    $region26: #{tpu_custom_call.1} parent=1 // pred_check
      _
    $region27: #{tpu_custom_call.1} parent=1 // pred_check_branch
      %57 = sbr.rel (0) target = $region29
    $region28: #{tpu_custom_call.1} parent=1 // pred_region
      %58 = dma.done [#allocation7], 2048
    $region29: #{tpu_custom_call.1} parent=1 // pred_fallthru
      _
    // Predicated region
    $region30: #{tpu_custom_call.1} parent=1 // pred_check
      _
    $region31: #{tpu_custom_call.1} parent=1 // pred_check_branch
      %60 = sbr.rel (0) target = $region33
    $region32: #{tpu_custom_call.1} parent=1 // pred_region
      %61 = dma.done [#allocation7], 2048
    $region33: #{tpu_custom_call.1} parent=1 // pred_fallthru
      _
    %63 = vst [vmem:[#allocation2] sm:$0xf] 0
    %64 = vst [vmem:[#allocation2 + $0x4] sm:$0xf] 0
    %v65 = vld [vmem:[#allocation3] sm:$0xff]
    %v66 = vld [vmem:[#allocation3 + $0x8] sm:$0xff]
    %v67 = vpack.c.bf16 %v66, %v65
    %v69 = vunpack.c.l.b16 %v67
    %v70 = vunpack.c.h.b16 %v67
    %v71 = vpack.c.b16 %v69, %v69
    %v72 = vpack.c.b16 %v70, %v70
    %vm75 = vcmask 355328
    %76 = vst.msk [vmem:[#allocation2] sm:$0xf] %vm75, %v71
    %77 = vst.msk [vmem:[#allocation2 + $0x4] sm:$0xf] %vm75, %v72
    %v78 = vld [vmem:[#allocation2] sm:$0xf]
    %v79 = vld [vmem:[#allocation2 + $0x4] sm:$0xf]
    %v80 = vld [vmem:[#allocation6] sm:$0xff]
    %v81 = vld [vmem:[#allocation6 + $0x8] sm:$0xff]
    %v82 = vld [vmem:[#allocation6 + $0x10] sm:$0xff]
    %v83 = vld [vmem:[#allocation6 + $0x18] sm:$0xff]
    %v84 = vld [vmem:[#allocation6 + $0x20] sm:$0xff]
    %v85 = vld [vmem:[#allocation6 + $0x28] sm:$0xff]
    %v86 = vld [vmem:[#allocation6 + $0x30] sm:$0xff]
    %v87 = vld [vmem:[#allocation6 + $0x38] sm:$0xff]
    %v88 = vld [vmem:[#allocation6 + $0x40] sm:$0xff]
    %v89 = vld [vmem:[#allocation6 + $0x48] sm:$0xff]
    %v90 = vld [vmem:[#allocation6 + $0x50] sm:$0xff]
    %v91 = vld [vmem:[#allocation6 + $0x58] sm:$0xff]
    %v92 = vld [vmem:[#allocation6 + $0x60] sm:$0xff]
    %v93 = vld [vmem:[#allocation6 + $0x68] sm:$0xff]
    %v94 = vld [vmem:[#allocation6 + $0x70] sm:$0xff]
    %v95 = vld [vmem:[#allocation6 + $0x78] sm:$0xff]
    %v96 = vld [vmem:[%s2] sm:$0x3]
    %v98 = vlaneseq
    %v99 = vshrl.u32 %v98, 7
    %v100 = vsub.s32 0, %v99
    %v101 = vrot.slane %v96, %v100
    %v102 = vlaneseq
    %v103 = vshrl.u32 %v102, 7
    %v104 = vsub.s32 1, %v103
    %v105 = vrot.slane %v96, %v104
    %v110 = vunpack.c.l.b16 %v78
    %v111 = vunpack.c.l.b16 %v79
    %v112 = vpack.c.b16 %v111, %v110
    %v130 = vunpack.c.l.b16 %v80
    %v131 = vunpack.c.h.b16 %v80
    %v132 = vunpack.c.l.b16 %v81
    %v133 = vunpack.c.h.b16 %v81
    %v134 = vunpack.c.l.b16 %v82
    %v135 = vunpack.c.h.b16 %v82
    %v136 = vunpack.c.l.b16 %v83
    %v137 = vunpack.c.h.b16 %v83
    %v138 = vunpack.c.l.b16 %v84
    %v139 = vunpack.c.h.b16 %v84
    %v140 = vunpack.c.l.b16 %v85
    %v141 = vunpack.c.h.b16 %v85
    %v142 = vunpack.c.l.b16 %v86
    %v143 = vunpack.c.h.b16 %v86
    %v144 = vunpack.c.l.b16 %v87
    %v145 = vunpack.c.h.b16 %v87
    %v146 = vunpack.c.l.b16 %v88
    %v147 = vunpack.c.h.b16 %v88
    %v148 = vunpack.c.l.b16 %v89
    %v149 = vunpack.c.h.b16 %v89
    %v150 = vunpack.c.l.b16 %v90
    %v151 = vunpack.c.h.b16 %v90
    %v152 = vunpack.c.l.b16 %v91
    %v153 = vunpack.c.h.b16 %v91
    %v154 = vunpack.c.l.b16 %v92
    %v155 = vunpack.c.h.b16 %v92
    %v156 = vunpack.c.l.b16 %v93
    %v157 = vunpack.c.h.b16 %v93
    %v158 = vunpack.c.l.b16 %v94
    %v159 = vunpack.c.h.b16 %v94
    %v160 = vunpack.c.l.b16 %v95
    %v161 = vunpack.c.h.b16 %v95
    %v162 = vpack.c.b16 %v132, %v130
    %v163 = vpack.c.b16 %v133, %v131
    %v164 = vpack.c.b16 %v136, %v134
    %v165 = vpack.c.b16 %v137, %v135
    %v166 = vpack.c.b16 %v140, %v138
    %v167 = vpack.c.b16 %v141, %v139
    %v168 = vpack.c.b16 %v144, %v142
    %v169 = vpack.c.b16 %v145, %v143
    %v170 = vpack.c.b16 %v148, %v146
    %v171 = vpack.c.b16 %v149, %v147
    %v172 = vpack.c.b16 %v152, %v150
    %v173 = vpack.c.b16 %v153, %v151
    %v174 = vpack.c.b16 %v156, %v154
    %v175 = vpack.c.b16 %v157, %v155
    %v176 = vpack.c.b16 %v160, %v158
    %v177 = vpack.c.b16 %v161, %v159
    %194 = vmatprep.subr.bf16.mxu0 %v177
    %195 = vmatpush1.bf16.msra.mxu0 %v176
    %196 = vmatprep.subr.bf16.mxu0 %v175
    %197 = vmatpush1.bf16.msra.mxu0 %v174
    %198 = vmatprep.subr.bf16.mxu0 %v173
    %199 = vmatpush1.bf16.msra.mxu0 %v172
    %200 = vmatprep.subr.bf16.mxu0 %v171
    %201 = vmatpush1.bf16.msra.mxu0 %v170
    %202 = vmatprep.subr.bf16.mxu0 %v169
    %203 = vmatpush1.bf16.msra.mxu0 %v168
    %204 = vmatprep.subr.bf16.mxu0 %v167
    %205 = vmatpush1.bf16.msra.mxu0 %v166
    %206 = vmatprep.subr.bf16.mxu0 %v165
    %207 = vmatpush1.bf16.msra.mxu0 %v164
    %208 = vmatprep.subr.bf16.mxu0 %v163
    %209 = vmatpush1.bf16.msra.mxu0 %v162
    %210 = vmatprep.subr.bf16.mxu0 0
    %211 = vmatpush2.bf16.msra.mxu0 0
    %212 = vmatprep.subr.bf16.mxu0 0
    %213 = vmatpush2.bf16.msra.mxu0 0
    %214 = vmatprep.subr.bf16.mxu0 0
    %215 = vmatpush2.bf16.msra.mxu0 0
    %216 = vmatprep.subr.bf16.mxu0 0
    %217 = vmatpush2.bf16.msra.mxu0 0
    %218 = vmatprep.subr.bf16.mxu0 0
    %219 = vmatpush2.bf16.msra.mxu0 0
    %220 = vmatprep.subr.bf16.mxu0 0
    %221 = vmatpush2.bf16.msra.mxu0 0
    %222 = vmatprep.subr.bf16.mxu0 0
    %223 = vmatpush2.bf16.msra.mxu0 0
    %224 = vmatprep.subr.bf16.mxu0 0
    %225 = vmatpush2.bf16.msra.mxu0 0
    %226 = vmatprep.mubr.bf16.mxu0 0
    %227 = vmatmul.mubr.bf16.gmra.mxu0 %v112
    %v228 = vpop.f32.mrf.mxu0
    %v229 = vadd.f32 %v101, %v228
    %v230 = vpop.f32.mrf.mxu0
    %v231 = vadd.f32 %v105, %v230
    %v232 = vpop.f32.mrf.mxu0
    %v233 = vadd.f32 %v101, %v232
    %v234 = vpop.f32.mrf.mxu0
    %v235 = vadd.f32 %v105, %v234
    %236 = vdwg.mxu0
    %v237 = vmax.f32 %v229, 0.0
    %v238 = vmax.f32 %v231, 0.0
    %v239 = vmax.f32 %v233, 0.0
    %v240 = vmax.f32 %v235, 0.0
    %v241 = vpack.c.bf16 %v239, %v237
    %v242 = vpack.c.bf16 %v240, %v238
    %v243 = vld [vmem:[#allocation8] sm:$0xf]
    %v244 = vld [vmem:[#allocation8 + $0x4] sm:$0xf]
    %v245 = vld [vmem:[#allocation8 + $0x8] sm:$0xf]
    %v246 = vld [vmem:[#allocation8 + $0xc] sm:$0xf]
    %v247 = vld [vmem:[#allocation8 + $0x10] sm:$0xf]
    %v248 = vld [vmem:[#allocation8 + $0x14] sm:$0xf]
    %v249 = vld [vmem:[#allocation8 + $0x18] sm:$0xf]
    %v250 = vld [vmem:[#allocation8 + $0x1c] sm:$0xf]
    %v251 = vld [vmem:[#allocation8 + $0x20] sm:$0xf]
    %v252 = vld [vmem:[#allocation8 + $0x24] sm:$0xf]
    %v253 = vld [vmem:[#allocation8 + $0x28] sm:$0xf]
    %v254 = vld [vmem:[#allocation8 + $0x2c] sm:$0xf]
    %v255 = vld [vmem:[#allocation8 + $0x30] sm:$0xf]
    %v256 = vld [vmem:[#allocation8 + $0x34] sm:$0xf]
    %v257 = vld [vmem:[#allocation8 + $0x38] sm:$0xf]
    %v258 = vld [vmem:[#allocation8 + $0x3c] sm:$0xf]
    %v259 = vld [vmem:[#allocation8 + $0x40] sm:$0xf]
    %v260 = vld [vmem:[#allocation8 + $0x44] sm:$0xf]
    %v261 = vld [vmem:[#allocation8 + $0x48] sm:$0xf]
    %v262 = vld [vmem:[#allocation8 + $0x4c] sm:$0xf]
    %v263 = vld [vmem:[#allocation8 + $0x50] sm:$0xf]
    %v264 = vld [vmem:[#allocation8 + $0x54] sm:$0xf]
    %v265 = vld [vmem:[#allocation8 + $0x58] sm:$0xf]
    %v266 = vld [vmem:[#allocation8 + $0x5c] sm:$0xf]
    %v267 = vld [vmem:[#allocation8 + $0x60] sm:$0xf]
    %v268 = vld [vmem:[#allocation8 + $0x64] sm:$0xf]
    %v269 = vld [vmem:[#allocation8 + $0x68] sm:$0xf]
    %v270 = vld [vmem:[#allocation8 + $0x6c] sm:$0xf]
    %v271 = vld [vmem:[#allocation8 + $0x70] sm:$0xf]
    %v272 = vld [vmem:[#allocation8 + $0x74] sm:$0xf]
    %v273 = vld [vmem:[#allocation8 + $0x78] sm:$0xf]
    %v274 = vld [vmem:[#allocation8 + $0x7c] sm:$0xf]
    %v275 = vld [vmem:[%s4] sm:$0x1]
    %v277 = vlaneseq
    %v278 = vshrl.u32 %v277, 7
    %v279 = vsub.s32 0, %v278
    %v280 = vrot.slane %v275, %v279
    %v314 = vunpack.c.l.b16 %v243
    %v315 = vunpack.c.l.b16 %v244
    %v316 = vunpack.c.l.b16 %v245
    %v317 = vunpack.c.l.b16 %v246
    %v318 = vunpack.c.l.b16 %v247
    %v319 = vunpack.c.l.b16 %v248
    %v320 = vunpack.c.l.b16 %v249
    %v321 = vunpack.c.l.b16 %v250
    %v322 = vunpack.c.l.b16 %v251
    %v323 = vunpack.c.l.b16 %v252
    %v324 = vunpack.c.l.b16 %v253
    %v325 = vunpack.c.l.b16 %v254
    %v326 = vunpack.c.l.b16 %v255
    %v327 = vunpack.c.l.b16 %v256
    %v328 = vunpack.c.l.b16 %v257
    %v329 = vunpack.c.l.b16 %v258
    %v330 = vunpack.c.l.b16 %v259
    %v331 = vunpack.c.l.b16 %v260
    %v332 = vunpack.c.l.b16 %v261
    %v333 = vunpack.c.l.b16 %v262
    %v334 = vunpack.c.l.b16 %v263
    %v335 = vunpack.c.l.b16 %v264
    %v336 = vunpack.c.l.b16 %v265
    %v337 = vunpack.c.l.b16 %v266
    %v338 = vunpack.c.l.b16 %v267
    %v339 = vunpack.c.l.b16 %v268
    %v340 = vunpack.c.l.b16 %v269
    %v341 = vunpack.c.l.b16 %v270
    %v342 = vunpack.c.l.b16 %v271
    %v343 = vunpack.c.l.b16 %v272
    %v344 = vunpack.c.l.b16 %v273
    %v345 = vunpack.c.l.b16 %v274
    %v346 = vpack.c.b16 %v315, %v314
    %v347 = vpack.c.b16 %v317, %v316
    %v348 = vpack.c.b16 %v319, %v318
    %v349 = vpack.c.b16 %v321, %v320
    %v350 = vpack.c.b16 %v323, %v322
    %v351 = vpack.c.b16 %v325, %v324
    %v352 = vpack.c.b16 %v327, %v326
    %v353 = vpack.c.b16 %v329, %v328
    %v354 = vpack.c.b16 %v331, %v330
    %v355 = vpack.c.b16 %v333, %v332
    %v356 = vpack.c.b16 %v335, %v334
    %v357 = vpack.c.b16 %v337, %v336
    %v358 = vpack.c.b16 %v339, %v338
    %v359 = vpack.c.b16 %v341, %v340
    %v360 = vpack.c.b16 %v343, %v342
    %v361 = vpack.c.b16 %v345, %v344
    %378 = vmatprep.subr.bf16.mxu0 0
    %379 = vmatpush1.bf16.msra.mxu0 %v353
    %380 = vmatprep.subr.bf16.mxu0 0
    %381 = vmatpush1.bf16.msra.mxu0 %v352
    %382 = vmatprep.subr.bf16.mxu0 0
    %383 = vmatpush1.bf16.msra.mxu0 %v351
    %384 = vmatprep.subr.bf16.mxu0 0
    %385 = vmatpush1.bf16.msra.mxu0 %v350
    %386 = vmatprep.subr.bf16.mxu0 0
    %387 = vmatpush1.bf16.msra.mxu0 %v349
    %388 = vmatprep.subr.bf16.mxu0 0
    %389 = vmatpush1.bf16.msra.mxu0 %v348
    %390 = vmatprep.subr.bf16.mxu0 0
    %391 = vmatpush1.bf16.msra.mxu0 %v347
    %392 = vmatprep.subr.bf16.mxu0 0
    %393 = vmatpush1.bf16.msra.mxu0 %v346
    %394 = vmatprep.subr.bf16.mxu0 0
    %395 = vmatpush2.bf16.msra.mxu0 %v361
    %396 = vmatprep.subr.bf16.mxu0 0
    %397 = vmatpush2.bf16.msra.mxu0 %v360
    %398 = vmatprep.subr.bf16.mxu0 0
    %399 = vmatpush2.bf16.msra.mxu0 %v359
    %400 = vmatprep.subr.bf16.mxu0 0
    %401 = vmatpush2.bf16.msra.mxu0 %v358
    %402 = vmatprep.subr.bf16.mxu0 0
    %403 = vmatpush2.bf16.msra.mxu0 %v357
    %404 = vmatprep.subr.bf16.mxu0 0
    %405 = vmatpush2.bf16.msra.mxu0 %v356
    %406 = vmatprep.subr.bf16.mxu0 0
    %407 = vmatpush2.bf16.msra.mxu0 %v355
    %408 = vmatprep.subr.bf16.mxu0 0
    %409 = vmatpush2.bf16.msra.mxu0 %v354
    %410 = vmatprep.mubr.bf16.mxu0 %v242
    %411 = vmatmul.mubr.bf16.gmra.mxu0 %v241
    %v412 = vpop.f32.mrf.mxu0
    %v413 = vadd.f32 %v280, %v412
    %v414 = vpop.f32.mrf.mxu0
    %v415 = vpop.f32.mrf.mxu0
    %v416 = vadd.f32 %v280, %v415
    %v417 = vpop.f32.mrf.mxu0
    %418 = vdwg.mxu0
    %419 = vst [vmem:[#allocation9] sm:$0xff] %v413
    %420 = vst [vmem:[#allocation9 + $0x8] sm:$0xff] %v416
    // Predicated region
    $region34: #{tpu_custom_call.1} parent=1 // pred_check
      _
    $region35: #{tpu_custom_call.1} parent=1 // pred_check_branch
      %422 = sbr.rel (0) target = $region37
    $region36: #{tpu_custom_call.1} parent=1 // pred_region
      %s424 = ssub.s32 256, 256
      %425 = vsyncadd [#allocation5], %s424
      %s426 = sshll.u32 [#allocation9], 4
      %s427 = int_to_ptr.vmem [resolvable:$true] %s426
      %432 = dma.vmem_to_hbm [thread:$0]  %s427, 256, %s5, [#allocation5], 128, 128, 8
    $region37: #{tpu_custom_call.1} parent=1 // pred_fallthru
      _
    // Predicated region
    $region38: #{tpu_custom_call.1} parent=1 // pred_check
      _
    $region39: #{tpu_custom_call.1} parent=1 // pred_check_branch
      %434 = sbr.rel (0) target = $region41
    $region40: #{tpu_custom_call.1} parent=1 // pred_region
      %435 = dma.done [#allocation5], 256
    $region41: #{tpu_custom_call.1} parent=1 // pred_fallthru
      _
    %436 = vsyncpa [#allocation4], 1
    %437 = vsyncpa [#allocation7], 1
    %438 = vsyncpa [#allocation5], 1

</llo_original>
